<compile_context>
chip_gen: v5e
topology: v5e:2x2
jax: 0.10.0
libtpu: 0.0.40
codegen_flags: <defaults>
</compile_context>

<pallas_src>
import functools
import math

import jax
import jax.numpy as jnp
from jax import lax
from jax.experimental import pallas as pl
from jax.experimental.pallas import tpu as pltpu


_TARGET_BUFFER_BYTES = 2 << 20   # ~2 MiB of HBM traffic per input buffer per grid step


def _feature_map(x, use_tanh_gelu):
    if use_tanh_gelu:
        # tanh approximation: transcendental goes to the EUP slot instead of a VALU
        # erf polynomial. ~1e-3 deviation from exact erf GELU -> gated behind a flag.
        c = math.sqrt(2.0 / math.pi)
        g = 0.5 * x * (1.0 + jnp.tanh(c * (x + 0.044715 * x * x * x)))
    else:
        # exact erf form, matches torch.nn.functional.gelu default
        g = 0.5 * x * (1.0 + lax.erf(x * (1.0 / math.sqrt(2.0))))
    return g + 1.0


def _attend_chunk(q_ref, k_ref, v_ref, o_ref, sl, *, inv_scaling, use_tanh_gelu,
                  approx_reciprocal):
    """Process one lane chunk (all of E, `sl` lanes) of the current block."""
    q = _feature_map(q_ref[:, :, sl].astype(jnp.float32), use_tanh_gelu)
    k = _feature_map(k_ref[:, :, sl].astype(jnp.float32), use_tanh_gelu)

    # Fold 1/sqrt(E) into the reduced (1, chunk) dot: one fewer full-tile VALU multiply.
    dot = jnp.sum(q * k, axis=1, keepdims=True) * inv_scaling   # (Bb, 1, chunk)
    energy = dot * q                                            # (Bb, E, chunk)

    # Numerically stable softmax over the embed (sublane) axis.
    m = jnp.max(energy, axis=1, keepdims=True)
    e = jnp.exp(energy - m)
    denom = jnp.sum(e, axis=1, keepdims=True)
    attn = e * pl.reciprocal(denom, approx=approx_reciprocal)

    # Load values late -> shorter liveness, less vreg pressure.
    v = v_ref[:, :, sl].astype(jnp.float32)
    o_ref[:, :, sl] = (attn * v).astype(o_ref.dtype)


def _cross_attention_kernel(q_ref, k_ref, v_ref, o_ref, *, inv_scaling,
                            use_tanh_gelu, approx_reciprocal, lane_chunk):
    ts = q_ref.shape[-1]
    kw = dict(inv_scaling=inv_scaling, use_tanh_gelu=use_tanh_gelu,
              approx_reciprocal=approx_reciprocal)
    if lane_chunk is None or lane_chunk >= ts or ts % lane_chunk != 0:
        # Small (or non-128-aligned full-S) block: one shot.
        _attend_chunk(q_ref, k_ref, v_ref, o_ref, slice(None), **kw)
    else:
        # Strip-mine the lane axis to bound the live vreg set at large tiles.
        n = ts // lane_chunk

        def body(c, carry):
            s0 = pl.multiple_of(c * lane_chunk, lane_chunk)
            _attend_chunk(q_ref, k_ref, v_ref, o_ref, pl.ds(s0, lane_chunk), **kw)
            return carry

        lax.fori_loop(0, n, body, 0, unroll=min(n, 8))


def _default_vmem_limit_bytes():
    # Prefer the real hardware query; fall back conservatively (48 MiB is safe on every
    # generation, including v7x whose TC has only 64 MiB physical VMEM).
    try:
        cap = int(pltpu.get_tpu_info().vmem_capacity_bytes)
        if cap > 0:
            return int(0.75 * cap)      # ~96 MiB on v5e/v6e, ~48 MiB on v7x
    except Exception:
        pass
    return 48 << 20


def _choose_tiles(B, E, S, itemsize, vmem_limit_bytes):
    """Pick (batch_tile, seq_tile) targeting ~_TARGET_BUFFER_BYTES per input per step."""
    col_bytes = max(1, E * itemsize)
    want_lanes = max(128, _TARGET_BUFFER_BYTES // col_bytes)

    # VMEM cap: 3 inputs + 1 output, double-buffered (f32 temporaries are bounded by the
    # in-kernel lane-chunk strip-mining, so they are small relative to the buffers).
    per_lane_resident = max(1, E * (4 * 2 * itemsize))
    cap_lanes = max(128, int(0.8 * vmem_limit_bytes) // per_lane_resident)
    want_lanes = min(want_lanes, cap_lanes)

    if want_lanes >= S:
        ts = S                                   # full-S block (any S is legal here)
        bb = max(1, min(B, want_lanes // max(S, 1)))
        if B >= 2:
            bb = min(bb, max(1, B // 2))         # keep >= 2 grid steps for megacore
        while bb > 1 and B % bb != 0:
            bb -= 1
    else:
        ts = max(128, (want_lanes // 128) * 128)  # multiple of 128; last tile masked
        bb = 1

    # If B == 1 and one tile would cover everything, split S so both TCs get work.
    if B == 1 and bb == 1 and ts == S and S >= 256:
        half = pl.cdiv(pl.cdiv(S, 2), 128) * 128
        if half < S:
            ts = half
    return bb, ts


def _choose_lane_chunk(E, ts):
    """In-kernel strip-mine width: ~8K f32 elements per chunk, divisor of ts, mult of 128."""
    if ts % 128 != 0:
        # TODO(synk): unaligned full-S blocks are processed in one shot (no strip-mine).
        return None
    want = max(128, min(1024, (8192 // max(E, 1)) // 128 * 128))
    c = want
    while c >= 128 and ts % c != 0:
        c -= 128
    if c < 128 or c >= ts:
        return None
    return c


def cross_attention(query, keys, values, embed_size, *, seq_tile=None, batch_tile=None,
                    lane_chunk=None, use_tanh_gelu=False, approx_reciprocal=None,
                    vmem_limit_bytes=None):
    """query/keys/values: [B, E, S] (f32 or bf16). Returns [B, E, S] in the input dtype."""
    B, E, S = query.shape
    assert keys.shape == (B, E, S) and values.shape == (B, E, S)

    inv_scaling = 1.0 / (float(embed_size) ** 0.5)

    if vmem_limit_bytes is None:
        vmem_limit_bytes = _default_vmem_limit_bytes()
    if approx_reciprocal is None:
        # vrcp error (~2e-4) is far below bf16 output rounding; keep exact path for f32.
        approx_reciprocal = query.dtype == jnp.bfloat16

    itemsize = jnp.dtype(query.dtype).itemsize
    if seq_tile is not None or batch_tile is not None:
        ts = min(seq_tile, S) if seq_tile is not None else S
        if ts < S and ts % 128 != 0:
            raise ValueError("seq_tile must be a multiple of 128 (or >= S)")
        bb = batch_tile if batch_tile is not None else 1
        bb = max(1, min(bb, B))
        while bb > 1 and B % bb != 0:
            bb -= 1
    else:
        bb, ts = _choose_tiles(B, E, S, itemsize, vmem_limit_bytes)

    if lane_chunk is None:
        lane_chunk = _choose_lane_chunk(E, ts)
    elif lane_chunk >= ts or ts % lane_chunk != 0:
        lane_chunk = None

    spec = pl.BlockSpec((bb, E, ts), lambda b, s: (b, 0, s))
    kernel = functools.partial(
        _cross_attention_kernel,
        inv_scaling=inv_scaling,
        use_tanh_gelu=use_tanh_gelu,
        approx_reciprocal=approx_reciprocal,
        lane_chunk=lane_chunk,
    )

    return pl.pallas_call(
        kernel,
        out_shape=jax.ShapeDtypeStruct((B, E, S), query.dtype),
        grid_spec=pltpu.PrefetchScalarGridSpec(
            num_scalar_prefetch=0,
            grid=(B // bb, pl.cdiv(S, ts)),
            in_specs=[spec, spec, spec],
            out_specs=spec,
            # NOTE: if xprof ever shows exposed input DMA, bump the input specs to
            # pipeline_mode=pl.Buffered(3) (re-check the v7x VMEM budget first).
        ),
        compiler_params=pltpu.CompilerParams(
            # Both axes are independent -> megacore-shardable on v7x; harmless elsewhere.
            dimension_semantics=("parallel", "parallel"),
            vmem_limit_bytes=vmem_limit_bytes,
        ),
    )(query, keys, values)


def _cross_attention_ref(query, keys, values, embed_size):
    scaling = float(embed_size) ** 0.5
    q = jax.nn.gelu(query, approximate=False) + 1.0
    k = jax.nn.gelu(keys, approximate=False) + 1.0
    energy = jnp.sum(q * k, axis=1, keepdims=True) * q / scaling
    return jax.nn.softmax(energy, axis=1) * values


if __name__ == "__main__":
    key = jax.random.PRNGKey(0)

    # --- main f32 test (S not a multiple of 128 -> full-S block path) ---
    B, E, S = 2, 16, 200
    kq, kk, kv = jax.random.split(key, 3)
    query = jax.random.normal(kq, (B, E, S), dtype=jnp.float32)
    keys = jax.random.normal(kk, (B, E, S), dtype=jnp.float32)
    values = jax.random.normal(kv, (B, E, S), dtype=jnp.float32)

    out = jax.block_until_ready(cross_attention(query, keys, values, embed_size=E))
    ref = _cross_attention_ref(query, keys, values, embed_size=E)
    assert out.shape == (B, E, S)
    assert jnp.allclose(out, ref, atol=1e-5, rtol=1e-5), "f32 mismatch vs. JAX reference"

    # --- E not a multiple of 8 (sublane) ---
    E2 = 12
    kq2, kk2, kv2 = jax.random.split(jax.random.PRNGKey(1), 3)
    q2 = jax.random.normal(kq2, (B, E2, S), dtype=jnp.float32)
    k2 = jax.random.normal(kk2, (B, E2, S), dtype=jnp.float32)
    v2 = jax.random.normal(kv2, (B, E2, S), dtype=jnp.float32)
    out2 = jax.block_until_ready(cross_attention(q2, k2, v2, embed_size=E2))
    ref2 = _cross_attention_ref(q2, k2, v2, embed_size=E2)
    assert jnp.allclose(out2, ref2, atol=1e-5, rtol=1e-5), "non-aligned-E mismatch"

    # --- bf16 I/O (halves HBM traffic; f32 compute inside, approx reciprocal auto-on) ---
    qb, kb, vb = (x.astype(jnp.bfloat16) for x in (query, keys, values))
    outb = jax.block_until_ready(cross_attention(qb, kb, vb, embed_size=E))
    refb = _cross_attention_ref(qb.astype(jnp.float32), kb.astype(jnp.float32),
                                vb.astype(jnp.float32), embed_size=E)
    assert outb.dtype == jnp.bfloat16
    assert jnp.allclose(outb.astype(jnp.float32), refb, atol=5e-2, rtol=5e-2), "bf16 mismatch"

    # --- forced tiling: multi-tile S grid with masked final tile + strip-mined lane loop ---
    B3, E3, S3 = 1, 16, 640
    kq3, kk3, kv3 = jax.random.split(jax.random.PRNGKey(2), 3)
    q3 = jax.random.normal(kq3, (B3, E3, S3), dtype=jnp.float32)
    k3 = jax.random.normal(kk3, (B3, E3, S3), dtype=jnp.float32)
    v3 = jax.random.normal(kv3, (B3, E3, S3), dtype=jnp.float32)
    out3 = jax.block_until_ready(
        cross_attention(q3, k3, v3, embed_size=E3, seq_tile=256, lane_chunk=128))
    ref3 = _cross_attention_ref(q3, k3, v3, embed_size=E3)
    assert jnp.allclose(out3, ref3, atol=1e-5, rtol=1e-5), "tiled/strip-mined mismatch"

    # --- gated fast path: tanh-GELU (EUP) + approx reciprocal; looser tolerance ---
    outa = jax.block_until_ready(
        cross_attention(query, keys, values, embed_size=E,
                        use_tanh_gelu=True, approx_reciprocal=True))
    assert jnp.allclose(outa, ref, atol=5e-2, rtol=5e-2), "approx-path mismatch"

    print("KERNEL_OK")
</pallas_src>

<mosaic_0001>
module attributes {stable_mosaic.version = 11 : i64} {
  func.func @_cross_attention_kernel(%arg0: i32, %arg1: i32, %arg2: memref<1x16x200xf32, #tpu.memory_space<vmem>>, %arg3: memref<1x16x200xf32, #tpu.memory_space<vmem>>, %arg4: memref<1x16x200xf32, #tpu.memory_space<vmem>>, %arg5: memref<1x16x200xf32, #tpu.memory_space<vmem>>) attributes {dimension_semantics = [#tpu.dimension_semantics<parallel>, #tpu.dimension_semantics<parallel>], iteration_bounds = array<i64: 2, 1>, scalar_prefetch = 0 : i64, scratch_operands = 0 : i64, tpu.core_type = #tpu.core_type<tc>, window_params = [{transform_indices = @transform_0, window_bounds = array<i64: 1, 16, 200>}, {transform_indices = @transform_1, window_bounds = array<i64: 1, 16, 200>}, {transform_indices = @transform_2, window_bounds = array<i64: 1, 16, 200>}, {transform_indices = @transform_3, window_bounds = array<i64: 1, 16, 200>}]} {
    %c0 = arith.constant 0 : index
    %c0_0 = arith.constant 0 : index
    %c0_1 = arith.constant 0 : index
    %0 = vector.load %arg2[%c0, %c0_0, %c0_1] : memref<1x16x200xf32, #tpu.memory_space<vmem>>, vector<1x16x200xf32>
    %cst = arith.constant 5.000000e-01 : f32
    %1 = vector.broadcast %cst : f32 to vector<1x16x200xf32>
    %2 = arith.mulf %1, %0 : vector<1x16x200xf32>
    %cst_2 = arith.constant 0.707106769 : f32
    %3 = vector.broadcast %cst_2 : f32 to vector<1x16x200xf32>
    %4 = arith.mulf %0, %3 : vector<1x16x200xf32>
    %5 = math.erf %4 : vector<1x16x200xf32>
    %cst_3 = arith.constant 1.000000e+00 : f32
    %6 = vector.broadcast %cst_3 : f32 to vector<1x16x200xf32>
    %7 = arith.addf %6, %5 : vector<1x16x200xf32>
    %8 = arith.mulf %2, %7 : vector<1x16x200xf32>
    %cst_4 = arith.constant 1.000000e+00 : f32
    %9 = vector.broadcast %cst_4 : f32 to vector<1x16x200xf32>
    %10 = arith.addf %8, %9 : vector<1x16x200xf32>
    %c0_5 = arith.constant 0 : index
    %c0_6 = arith.constant 0 : index
    %c0_7 = arith.constant 0 : index
    %11 = vector.load %arg3[%c0_5, %c0_6, %c0_7] : memref<1x16x200xf32, #tpu.memory_space<vmem>>, vector<1x16x200xf32>
    %cst_8 = arith.constant 5.000000e-01 : f32
    %12 = vector.broadcast %cst_8 : f32 to vector<1x16x200xf32>
    %13 = arith.mulf %12, %11 : vector<1x16x200xf32>
    %cst_9 = arith.constant 0.707106769 : f32
    %14 = vector.broadcast %cst_9 : f32 to vector<1x16x200xf32>
    %15 = arith.mulf %11, %14 : vector<1x16x200xf32>
    %16 = math.erf %15 : vector<1x16x200xf32>
    %cst_10 = arith.constant 1.000000e+00 : f32
    %17 = vector.broadcast %cst_10 : f32 to vector<1x16x200xf32>
    %18 = arith.addf %17, %16 : vector<1x16x200xf32>
    %19 = arith.mulf %13, %18 : vector<1x16x200xf32>
    %cst_11 = arith.constant 1.000000e+00 : f32
    %20 = vector.broadcast %cst_11 : f32 to vector<1x16x200xf32>
    %21 = arith.addf %19, %20 : vector<1x16x200xf32>
    %22 = arith.mulf %10, %21 : vector<1x16x200xf32>
    %cst_12 = arith.constant dense<0.000000e+00> : vector<1x200xf32>
    %23 = vector.multi_reduction <add>, %22, %cst_12 [1] : vector<1x16x200xf32> to vector<1x200xf32>
    %24 = vector.shape_cast %23 : vector<1x200xf32> to vector<1x1x200xf32>
    %cst_13 = arith.constant 2.500000e-01 : f32
    %25 = vector.broadcast %cst_13 : f32 to vector<1x1x200xf32>
    %26 = arith.mulf %24, %25 : vector<1x1x200xf32>
    %27 = vector.broadcast %26 : vector<1x1x200xf32> to vector<1x16x200xf32>
    %28 = arith.mulf %27, %10 : vector<1x16x200xf32>
    %cst_14 = arith.constant dense<0xFF800000> : vector<1x200xf32>
    %29 = vector.multi_reduction <maximumf>, %28, %cst_14 [1] : vector<1x16x200xf32> to vector<1x200xf32>
    %30 = vector.shape_cast %29 : vector<1x200xf32> to vector<1x1x200xf32>
    %31 = vector.broadcast %30 : vector<1x1x200xf32> to vector<1x16x200xf32>
    %32 = arith.subf %28, %31 : vector<1x16x200xf32>
    %33 = math.exp %32 : vector<1x16x200xf32>
    %cst_15 = arith.constant dense<0.000000e+00> : vector<1x200xf32>
    %34 = vector.multi_reduction <add>, %33, %cst_15 [1] : vector<1x16x200xf32> to vector<1x200xf32>
    %35 = vector.shape_cast %34 : vector<1x200xf32> to vector<1x1x200xf32>
    %36 = tpu.reciprocal %35 : vector<1x1x200xf32> -> vector<1x1x200xf32>
    %37 = vector.broadcast %36 : vector<1x1x200xf32> to vector<1x16x200xf32>
    %38 = arith.mulf %33, %37 : vector<1x16x200xf32>
    %c0_16 = arith.constant 0 : index
    %c0_17 = arith.constant 0 : index
    %c0_18 = arith.constant 0 : index
    %39 = vector.load %arg4[%c0_16, %c0_17, %c0_18] : memref<1x16x200xf32, #tpu.memory_space<vmem>>, vector<1x16x200xf32>
    %40 = arith.mulf %38, %39 : vector<1x16x200xf32>
    %c0_19 = arith.constant 0 : index
    %c0_20 = arith.constant 0 : index
    %c0_21 = arith.constant 0 : index
    %41 = vector.load %arg5[%c0_19, %c0_20, %c0_21] : memref<1x16x200xf32, #tpu.memory_space<vmem>>, vector<1x16x200xf32>
    tpu.vector_store %arg5[%c0_19, %c0_20, %c0_21], %40 {strides = array<i32>} : memref<1x16x200xf32, #tpu.memory_space<vmem>>, vector<1x16x200xf32>,
    return
  }
  func.func @transform_0(%arg0: i32, %arg1: i32) -> (i32, i32, i32) {
    %c0_i32 = arith.constant 0 : i32
    %c0_i32_0 = arith.constant 0 : i32
    return %arg0, %c0_i32, %arg1 : i32, i32, i32
  }
  func.func @transform_1(%arg0: i32, %arg1: i32) -> (i32, i32, i32) {
    %c0_i32 = arith.constant 0 : i32
    %c0_i32_0 = arith.constant 0 : i32
    return %arg0, %c0_i32, %arg1 : i32, i32, i32
  }
  func.func @transform_2(%arg0: i32, %arg1: i32) -> (i32, i32, i32) {
    %c0_i32 = arith.constant 0 : i32
    %c0_i32_0 = arith.constant 0 : i32
    return %arg0, %c0_i32, %arg1 : i32, i32, i32
  }
  func.func @transform_3(%arg0: i32, %arg1: i32) -> (i32, i32, i32) {
    %c0_i32 = arith.constant 0 : i32
    %c0_i32_0 = arith.constant 0 : i32
    return %arg0, %c0_i32, %arg1 : i32, i32, i32
  }
}

</mosaic_0001>

<llo_original>
// kernel: tpu_custom_call.1
$region0: #{tpu_custom_call.1}
  #allocation0 [shape = 'u32[]', space=smem, size = 0x4, offset = 0x4, fixed_abs, tag = 'smem constant byte address 0x4 - core index']
  #allocation1 [shape = 'u32[72,128]{1,0:T(1,128)}', space=vmem, size = 0x9000, scoped, tag = 'internal scratch']
  %s0 = inlined_call_operand.hbm [shape: f32[2,16,200], index: 0, kind: input, shape index: {}]
  %s1 = inlined_call_operand.hbm [shape: f32[2,16,200], index: 1, kind: input, shape index: {}]
  %s2 = inlined_call_operand.hbm [shape: f32[2,16,200], index: 2, kind: input, shape index: {}]
  %s3 = inlined_call_operand.hbm [shape: f32[2,16,200], index: 3, kind: output, shape index: {}]
  %s4 = sld [smem:[#allocation0]]
  $region57: #{tpu_custom_call.1} parent=0
    _
  %s6 = ssub.s32 1, %s4
  %s7 = scalar_select 0, %s6, %s4
  $region1: #{tpu_custom_call.1} parent=0
    #allocation2 [shape = 'u8[32768]{0}', space=vmem, size = 0x8000, scoped, tag = 'input window, operand 0']
    #allocation3 [shape = 's32[2]{0}', space=sflag, size = 0x8, scoped, tag = 'scoped memory for tpu_custom_call.1']
    #allocation4 [shape = 's32[2]{0}', space=sflag, size = 0x8, scoped, tag = 'scoped memory for tpu_custom_call.1']
    #allocation5 [shape = 'u8[32768]{0}', space=vmem, size = 0x8000, scoped, tag = 'input window, operand 1']
    #allocation6 [shape = 's32[2]{0}', space=sflag, size = 0x8, scoped, tag = 'scoped memory for tpu_custom_call.1']
    #allocation7 [shape = 'u8[32768]{0}', space=vmem, size = 0x8000, scoped, tag = 'input window, operand 2']
    #allocation8 [shape = 'u8[32768]{0}', space=vmem, size = 0x8000, scoped, tag = 'output window, operand 0']
    %8 = vsyncpa [#allocation3], 0
    %s9 = scalar_lea.sflag [#allocation3], 1
    %10 = vsyncpa %s9, 0
    %11 = vsyncpa [#allocation6], 0
    %s12 = scalar_lea.sflag [#allocation6], 1
    %13 = vsyncpa %s12, 0
    %14 = vsyncpa [#allocation4], 0
    %s15 = scalar_lea.sflag [#allocation4], 1
    %16 = vsyncpa %s15, 0
    loop: start=0, step=1, limit=4
    $region2: #{tpu_custom_call.1} parent=1 // loop_pre_header
      _
    $region3: #{tpu_custom_call.1} parent=1 // loop_header
      %s18 = sphi 0, %s22
      %p19 = scmp.ge.s32.totalorder %s18, 4
      %s25 = sphi 0, %s37
      %s26 = sphi 0, %s33
      %s27 = sphi 0, %s25
      %s28 = sphi 0, %s26
      %s29 = sphi 0, %s27
      %s30 = sphi 0, %s28
      %s42 = sphi 0, %s44
      %s45 = sphi 0, %s42
      %s46 = sphi 0, %s45
      %s62 = sphi 0, %s46
      %s70 = sphi 0, %s72
      %s73 = sphi 0, %s70
      %s74 = sphi 0, %s73
      %s90 = sphi 0, %s74
      %s98 = sphi 0, %s100
      %s101 = sphi 0, %s98
      %s102 = sphi 0, %s101
      %s118 = sphi 0, %s102
      %s126 = sphi 0, %s128
      %s129 = sphi 0, %s126
      %s130 = sphi 0, %s129
      %s146 = sphi 0, %s130
    $region4: #{tpu_custom_call.1} parent=1 // loop_header_branch
      %21 = sbr.rel (%p19) target = $region8
    $region5: #{tpu_custom_call.1} parent=1 // loop_body
      %s23 = ssub.s32 %s18, 1
      %s24 = ssub.s32 %s18, 2
      %s31 = sadd.s32 1, %s26
      %p32 = scmp.ge.s32.totalorder %s31, 1
      %s33 = scalar_select %p32, 0, %s31
      %s34 = sadd.s32 1, %s25
      %s35 = scalar_select %p32, %s34, %s25
      %p36 = scmp.ge.s32.totalorder %s35, 2
      %s37 = scalar_select %p36, 0, %s35
      %s38 = ssub.s32 %s25, %s37
      %s39 = ssub.s32 %s26, %s33
      %s40 = sor.u32 %s38, %s39
      %p41 = scmp.eq.s32.totalorder %s40, 0
      %s43 = sadd.s32 %s42, 1
      %s44 = scalar_select %p41, %s42, %s43
      %p47 = pneg %p41
      %p48 = scmp.eq.s32.totalorder %s18, 1
      %p49 = por %p47, %p48
      %p50 = scmp.ne.s32.totalorder %s42, %s45
      %p51 = scmp.eq.s32.totalorder %s18, 0
      %p52 = por %p50, %p51
      %p53 = scmp.ne.s32.totalorder %s42, %s45
      %p54 = scmp.eq.s32.totalorder %s23, 1
      %p55 = por %p53, %p54
      %p56 = scmp.ne.s32.totalorder %s45, %s46
      %p57 = scmp.eq.s32.totalorder %s23, 0
      %p58 = por %p56, %p57
      %p59 = scmp.ne.s32.totalorder %s45, %s46
      %p60 = scmp.eq.s32.totalorder %s24, 1
      %p61 = por %p59, %p60
      %p63 = scmp.ne.s32.totalorder %s46, %s62
      %p64 = scmp.eq.s32.totalorder %s24, 0
      %p65 = por %p63, %p64
      %s66 = ssub.s32 %s25, %s37
      %s67 = ssub.s32 %s26, %s33
      %s68 = sor.u32 %s66, %s67
      %p69 = scmp.eq.s32.totalorder %s68, 0
      %s71 = sadd.s32 %s70, 1
      %s72 = scalar_select %p69, %s70, %s71
      %p75 = pneg %p69
      %p76 = scmp.eq.s32.totalorder %s18, 1
      %p77 = por %p75, %p76
      %p78 = scmp.ne.s32.totalorder %s70, %s73
      %p79 = scmp.eq.s32.totalorder %s18, 0
      %p80 = por %p78, %p79
      %p81 = scmp.ne.s32.totalorder %s70, %s73
      %p82 = scmp.eq.s32.totalorder %s23, 1
      %p83 = por %p81, %p82
      %p84 = scmp.ne.s32.totalorder %s73, %s74
      %p85 = scmp.eq.s32.totalorder %s23, 0
      %p86 = por %p84, %p85
      %p87 = scmp.ne.s32.totalorder %s73, %s74
      %p88 = scmp.eq.s32.totalorder %s24, 1
      %p89 = por %p87, %p88
      %p91 = scmp.ne.s32.totalorder %s74, %s90
      %p92 = scmp.eq.s32.totalorder %s24, 0
      %p93 = por %p91, %p92
      %s94 = ssub.s32 %s25, %s37
      %s95 = ssub.s32 %s26, %s33
      %s96 = sor.u32 %s94, %s95
      %p97 = scmp.eq.s32.totalorder %s96, 0
      %s99 = sadd.s32 %s98, 1
      %s100 = scalar_select %p97, %s98, %s99
      %p103 = pneg %p97
      %p104 = scmp.eq.s32.totalorder %s18, 1
      %p105 = por %p103, %p104
      %p106 = scmp.ne.s32.totalorder %s98, %s101
      %p107 = scmp.eq.s32.totalorder %s18, 0
      %p108 = por %p106, %p107
      %p109 = scmp.ne.s32.totalorder %s98, %s101
      %p110 = scmp.eq.s32.totalorder %s23, 1
      %p111 = por %p109, %p110
      %p112 = scmp.ne.s32.totalorder %s101, %s102
      %p113 = scmp.eq.s32.totalorder %s23, 0
      %p114 = por %p112, %p113
      %p115 = scmp.ne.s32.totalorder %s101, %s102
      %p116 = scmp.eq.s32.totalorder %s24, 1
      %p117 = por %p115, %p116
      %p119 = scmp.ne.s32.totalorder %s102, %s118
      %p120 = scmp.eq.s32.totalorder %s24, 0
      %p121 = por %p119, %p120
      %s122 = ssub.s32 %s25, %s37
      %s123 = ssub.s32 %s26, %s33
      %s124 = sor.u32 %s122, %s123
      %p125 = scmp.eq.s32.totalorder %s124, 0
      %s127 = sadd.s32 %s126, 1
      %s128 = scalar_select %p125, %s126, %s127
      %p131 = pneg %p125
      %p132 = scmp.eq.s32.totalorder %s18, 1
      %p133 = por %p131, %p132
      %p134 = scmp.ne.s32.totalorder %s126, %s129
      %p135 = scmp.eq.s32.totalorder %s18, 0
      %p136 = por %p134, %p135
      %p137 = scmp.ne.s32.totalorder %s126, %s129
      %p138 = scmp.eq.s32.totalorder %s23, 1
      %p139 = por %p137, %p138
      %p140 = scmp.ne.s32.totalorder %s129, %s130
      %p141 = scmp.eq.s32.totalorder %s23, 0
      %p142 = por %p140, %p141
      %p143 = scmp.ne.s32.totalorder %s129, %s130
      %p144 = scmp.eq.s32.totalorder %s24, 1
      %p145 = por %p143, %p144
      %p147 = scmp.ne.s32.totalorder %s130, %s146
      %p148 = scmp.eq.s32.totalorder %s24, 0
      %p149 = por %p147, %p148
      %p150 = scmp.le.s32.totalorder 1, %s18
      %p151 = scmp.lt.s32.totalorder %s18, 3
      %p152 = pnand %p150, %p151
      %p153 = pneg %p152
      // Predicated region
      $region9: #{tpu_custom_call.1} parent=5 // pred_check
        _
      $region10: #{tpu_custom_call.1} parent=5 // pred_check_branch
        %155 = sbr.rel (%p152) target = $region12
      $region11: #{tpu_custom_call.1} parent=5 // pred_region
        %s156 = ssub.s32 %s18, 1
      $region12: #{tpu_custom_call.1} parent=5 // pred_fallthru
        _
      %p157 = scmp.lt.s32.totalorder %s18, 2
      // Predicated region
      $region13: #{tpu_custom_call.1} parent=5 // pred_check
        %p158 = pneg %p157
      $region14: #{tpu_custom_call.1} parent=5 // pred_check_branch
        %160 = sbr.rel (%p158) target = $region16
      $region15: #{tpu_custom_call.1} parent=5 // pred_region
        // Predicated region
        $region17: #{tpu_custom_call.1} parent=15 // pred_check
          %p161 = pneg %p52
        $region18: #{tpu_custom_call.1} parent=15 // pred_check_branch
          %163 = sbr.rel (%p161) target = $region20
        $region19: #{tpu_custom_call.1} parent=15 // pred_region
          %s164 = sand.u32 %s42, 1
          %s165 = scalar_lea.sflag [#allocation3], %s164
          %s166 = sand.u32 %s42, 1
          %s167 = smul.addr %s166, 32
          %s168 = scalar_lea.vmem [#allocation2], %s167
          %s169 = smul.u32 2, %s26
          %171 = vsyncadd %s165, 0
          %s172 = smul.addr %s25, 4
          %s173 = sadd.s32 %s169, %s172
          %s174 = smul.addr %s173, 8
          %s175 = scalar_lea.hbm %s0, %s174
          %s176 = sshll.u32 %s175, 4
          %s177 = int_to_ptr.hbm [resolvable:$true] %s176
          %s178 = sshll.u32 %s168, 4
          %s179 = int_to_ptr.vmem [resolvable:$true] %s178
          %184 = dma.hbm_to_vmem [thread:$0]  %s177, 512, %s179, %s165, 256, 256, 16
        $region20: #{tpu_custom_call.1} parent=15 // pred_fallthru
          _
        // Predicated region
        $region21: #{tpu_custom_call.1} parent=15 // pred_check
          %p185 = pneg %p80
        $region22: #{tpu_custom_call.1} parent=15 // pred_check_branch
          %187 = sbr.rel (%p185) target = $region24
        $region23: #{tpu_custom_call.1} parent=15 // pred_region
          %s188 = sand.u32 %s18, 1
          %s189 = scalar_lea.sflag [#allocation6], %s188
          %s190 = sand.u32 %s70, 1
          %s191 = smul.addr %s190, 32
          %s192 = scalar_lea.vmem [#allocation5], %s191
          %s193 = smul.u32 2, %s26
          %195 = vsyncadd %s189, 0
          %s196 = smul.addr %s25, 4
          %s197 = sadd.s32 %s193, %s196
          %s198 = smul.addr %s197, 8
          %s199 = scalar_lea.hbm %s1, %s198
          %s200 = sshll.u32 %s199, 4
          %s201 = int_to_ptr.hbm [resolvable:$true] %s200
          %s202 = sshll.u32 %s192, 4
          %s203 = int_to_ptr.vmem [resolvable:$true] %s202
          %208 = dma.hbm_to_vmem [thread:$0]  %s201, 512, %s203, %s189, 256, 256, 16
        $region24: #{tpu_custom_call.1} parent=15 // pred_fallthru
          _
        // Predicated region
        $region25: #{tpu_custom_call.1} parent=15 // pred_check
          %p209 = pneg %p108
        $region26: #{tpu_custom_call.1} parent=15 // pred_check_branch
          %211 = sbr.rel (%p209) target = $region28
        $region27: #{tpu_custom_call.1} parent=15 // pred_region
          %s212 = sand.u32 %s18, 1
          %s213 = scalar_lea.sflag [#allocation6], %s212
          %s214 = sand.u32 %s98, 1
          %s215 = smul.addr %s214, 32
          %s216 = scalar_lea.vmem [#allocation7], %s215
          %s217 = smul.u32 2, %s26
          %219 = vsyncadd %s213, 0
          %s220 = smul.addr %s25, 4
          %s221 = sadd.s32 %s217, %s220
          %s222 = smul.addr %s221, 8
          %s223 = scalar_lea.hbm %s2, %s222
          %s224 = sshll.u32 %s223, 4
          %s225 = int_to_ptr.hbm [resolvable:$true] %s224
          %s226 = sshll.u32 %s216, 4
          %s227 = int_to_ptr.vmem [resolvable:$true] %s226
          %232 = dma.hbm_to_vmem [thread:$0]  %s225, 512, %s227, %s213, 256, 256, 16
        $region28: #{tpu_custom_call.1} parent=15 // pred_fallthru
          _
      $region16: #{tpu_custom_call.1} parent=5 // pred_fallthru
        _
      %p233 = scmp.le.s32.totalorder 1, %s18
      %p234 = scmp.lt.s32.totalorder %s18, 3
      %p235 = pnand %p233, %p234
      %p236 = pneg %p235
      // Predicated region
      $region29: #{tpu_custom_call.1} parent=5 // pred_check
        _
      $region30: #{tpu_custom_call.1} parent=5 // pred_check_branch
        %238 = sbr.rel (%p235) target = $region32
      $region31: #{tpu_custom_call.1} parent=5 // pred_region
        %s239 = ssub.s32 %s18, 1
        %s240 = sand.u32 %s45, 1
        %s241 = scalar_lea.sflag [#allocation3], %s240
        %s242 = sand.u32 %s45, 1
        %s243 = smul.addr %s242, 32
        %s244 = scalar_lea.vmem [#allocation2], %s243
        // Predicated region
        $region33: #{tpu_custom_call.1} parent=31 // pred_check
          %p245 = pneg %p58
        $region34: #{tpu_custom_call.1} parent=31 // pred_check_branch
          %247 = sbr.rel (%p245) target = $region36
        $region35: #{tpu_custom_call.1} parent=31 // pred_region
          %249 = dma.done %s241, 512
        $region36: #{tpu_custom_call.1} parent=31 // pred_fallthru
          _
        %s250 = sand.u32 %s23, 1
        %s251 = scalar_lea.sflag [#allocation6], %s250
        %s252 = sand.u32 %s73, 1
        %s253 = smul.addr %s252, 32
        %s254 = scalar_lea.vmem [#allocation5], %s253
        // Predicated region
        $region37: #{tpu_custom_call.1} parent=31 // pred_check
          %p255 = pneg %p86
        $region38: #{tpu_custom_call.1} parent=31 // pred_check_branch
          %257 = sbr.rel (%p255) target = $region40
        $region39: #{tpu_custom_call.1} parent=31 // pred_region
          %259 = dma.done %s251, 512
        $region40: #{tpu_custom_call.1} parent=31 // pred_fallthru
          _
        %s260 = sand.u32 %s23, 1
        %s261 = scalar_lea.sflag [#allocation6], %s260
        %s262 = sand.u32 %s101, 1
        %s263 = smul.addr %s262, 32
        %s264 = scalar_lea.vmem [#allocation7], %s263
        // Predicated region
        $region41: #{tpu_custom_call.1} parent=31 // pred_check
          %p265 = pneg %p114
        $region42: #{tpu_custom_call.1} parent=31 // pred_check_branch
          %267 = sbr.rel (%p265) target = $region44
        $region43: #{tpu_custom_call.1} parent=31 // pred_region
          %269 = dma.done %s261, 512
        $region44: #{tpu_custom_call.1} parent=31 // pred_fallthru
          _
        %s270 = sand.u32 %s45, 1
        %s271 = scalar_lea.sflag [#allocation3], %s270
        %s272 = sand.u32 %s45, 1
        %s273 = smul.addr %s272, 32
        %s274 = scalar_lea.vmem [#allocation2], %s273
        %p275 = pneg %p58
        %p276 = pneg %p55
        %s277 = sand.u32 %s23, 1
        %s278 = scalar_lea.sflag [#allocation6], %s277
        %s279 = sand.u32 %s73, 1
        %s280 = smul.addr %s279, 32
        %s281 = scalar_lea.vmem [#allocation5], %s280
        %p282 = pneg %p86
        %p283 = pneg %p83
        %s284 = sand.u32 %s23, 1
        %s285 = scalar_lea.sflag [#allocation6], %s284
        %s286 = sand.u32 %s101, 1
        %s287 = smul.addr %s286, 32
        %s288 = scalar_lea.vmem [#allocation7], %s287
        %p289 = pneg %p114
        %p290 = pneg %p111
        %p291 = pneg %p142
        %p292 = pneg %p139
        %s293 = sand.u32 %s129, 1
        %s294 = scalar_lea.sflag [#allocation4], %s293
        %s295 = sand.u32 %s129, 1
        %s296 = smul.addr %s295, 32
        %s297 = scalar_lea.vmem [#allocation8], %s296
        %s298 = smul.u32 2, %s28
        %s299 = smul.u32 2, %s28
        %s300 = smul.u32 2, %s28
        %s301 = smul.u32 2, %s28
        %v302 = vld [vmem:[%s244] sm:$0xff]
        %v303 = vld [vmem:[%s244 + $0x8] sm:$0xff]
        %v304 = vld [vmem:[%s244 + $0x10] sm:$0xff]
        %v305 = vld [vmem:[%s244 + $0x18] sm:$0xff]
        %v306 = vmul.f32 %v302, 0.5
        %v307 = vmul.f32 %v303, 0.5
        %v308 = vmul.f32 %v304, 0.5
        %v309 = vmul.f32 %v305, 0.5
        %v310 = vmul.f32 %v302, 0.70710677
        %v311 = vmul.f32 %v303, 0.70710677
        %v312 = vmul.f32 %v304, 0.70710677
        %v313 = vmul.f32 %v305, 0.70710677
        %v314 = vmul.f32 %v310, %v310
        %v315 = vmin.f32 16.0, %v314
        %v316 = vmul.f32 %v315, 2.1237322e-06
        %v317 = vadd.f32 %v316, 0.00028619796
        %v318 = vmul.f32 %v315, %v317
        %v319 = vadd.f32 %v318, 0.0036580483
        %v320 = vmul.f32 %v315, %v319
        %v321 = vadd.f32 %v320, 0.05243302
        %v322 = vmul.f32 %v315, %v321
        %v323 = vadd.f32 %v322, 0.18741608
        %v324 = vmul.f32 %v315, %v323
        %v325 = vadd.f32 %v324, 1.1283791
        %v326 = vmul.f32 %v310, %v325
        %v327 = vmul.f32 %v315, 3.8918573e-05
        %v328 = vadd.f32 %v327, 0.001143296
        %v329 = vmul.f32 %v315, %v328
        %v330 = vadd.f32 %v329, 0.014752088
        %v331 = vmul.f32 %v315, %v330
        %v332 = vadd.f32 %v331, 0.112945676
        %v333 = vmul.f32 %v315, %v332
        %v334 = vadd.f32 %v333, 0.4994258
        %v335 = vmul.f32 %v315, %v334
        %v336 = vadd.f32 %v335, 1.0
        %v337 = vrcp.pop %v336
        %v338 = vmul.f32 %v336, %v337
        %v339 = vsub.f32 1.0, %v338
        %v340 = vmul.f32 %v337, %v339
        %v341 = vadd.f32 %v337, %v340
        %vm342 = vweird.f32 %v336
        %vm343 = vweird.f32 %v337
        %vm344 = vmor %vm342, %vm343
        %v345 = vsel %vm344, %v337, %v341
        %v346 = vand.u32 2147483647, %v336
        %vm347 = vcmp.eq.f32.partialorder %v346, 8.507059e+37
        %v348 = vand.u32 %v336, 2147483648
        %v349 = vor.u32 1.1754944e-38, %v348
        %v350 = vsel %vm347, %v349, %v345
        %v351 = vmul.f32 %v326, %v350
        %v352 = vmin.f32 %v351, 1.0
        %v353 = vmax.f32 %v352, -1.0
        %v354 = vmul.f32 %v311, %v311
        %v355 = vmin.f32 16.0, %v354
        %v356 = vmul.f32 %v355, 2.1237322e-06
        %v357 = vadd.f32 %v356, 0.00028619796
        %v358 = vmul.f32 %v355, %v357
        %v359 = vadd.f32 %v358, 0.0036580483
        %v360 = vmul.f32 %v355, %v359
        %v361 = vadd.f32 %v360, 0.05243302
        %v362 = vmul.f32 %v355, %v361
        %v363 = vadd.f32 %v362, 0.18741608
        %v364 = vmul.f32 %v355, %v363
        %v365 = vadd.f32 %v364, 1.1283791
        %v366 = vmul.f32 %v311, %v365
        %v367 = vmul.f32 %v355, 3.8918573e-05
        %v368 = vadd.f32 %v367, 0.001143296
        %v369 = vmul.f32 %v355, %v368
        %v370 = vadd.f32 %v369, 0.014752088
        %v371 = vmul.f32 %v355, %v370
        %v372 = vadd.f32 %v371, 0.112945676
        %v373 = vmul.f32 %v355, %v372
        %v374 = vadd.f32 %v373, 0.4994258
        %v375 = vmul.f32 %v355, %v374
        %v376 = vadd.f32 %v375, 1.0
        %v377 = vrcp.pop %v376
        %v378 = vmul.f32 %v376, %v377
        %v379 = vsub.f32 1.0, %v378
        %v380 = vmul.f32 %v377, %v379
        %v381 = vadd.f32 %v377, %v380
        %vm382 = vweird.f32 %v376
        %vm383 = vweird.f32 %v377
        %vm384 = vmor %vm382, %vm383
        %v385 = vsel %vm384, %v377, %v381
        %v386 = vand.u32 2147483647, %v376
        %vm387 = vcmp.eq.f32.partialorder %v386, 8.507059e+37
        %v388 = vand.u32 %v376, 2147483648
        %v389 = vor.u32 1.1754944e-38, %v388
        %v390 = vsel %vm387, %v389, %v385
        %v391 = vmul.f32 %v366, %v390
        %v392 = vmin.f32 %v391, 1.0
        %v393 = vmax.f32 %v392, -1.0
        %v394 = vmul.f32 %v312, %v312
        %v395 = vmin.f32 16.0, %v394
        %v396 = vmul.f32 %v395, 2.1237322e-06
        %v397 = vadd.f32 %v396, 0.00028619796
        %v398 = vmul.f32 %v395, %v397
        %v399 = vadd.f32 %v398, 0.0036580483
        %v400 = vmul.f32 %v395, %v399
        %v401 = vadd.f32 %v400, 0.05243302
        %v402 = vmul.f32 %v395, %v401
        %v403 = vadd.f32 %v402, 0.18741608
        %v404 = vmul.f32 %v395, %v403
        %v405 = vadd.f32 %v404, 1.1283791
        %v406 = vmul.f32 %v312, %v405
        %v407 = vmul.f32 %v395, 3.8918573e-05
        %v408 = vadd.f32 %v407, 0.001143296
        %v409 = vmul.f32 %v395, %v408
        %v410 = vadd.f32 %v409, 0.014752088
        %v411 = vmul.f32 %v395, %v410
        %v412 = vadd.f32 %v411, 0.112945676
        %v413 = vmul.f32 %v395, %v412
        %v414 = vadd.f32 %v413, 0.4994258
        %v415 = vmul.f32 %v395, %v414
        %v416 = vadd.f32 %v415, 1.0
        %v417 = vrcp.pop %v416
        %v418 = vmul.f32 %v416, %v417
        %v419 = vsub.f32 1.0, %v418
        %v420 = vmul.f32 %v417, %v419
        %v421 = vadd.f32 %v417, %v420
        %vm422 = vweird.f32 %v416
        %vm423 = vweird.f32 %v417
        %vm424 = vmor %vm422, %vm423
        %v425 = vsel %vm424, %v417, %v421
        %v426 = vand.u32 2147483647, %v416
        %vm427 = vcmp.eq.f32.partialorder %v426, 8.507059e+37
        %v428 = vand.u32 %v416, 2147483648
        %v429 = vor.u32 1.1754944e-38, %v428
        %v430 = vsel %vm427, %v429, %v425
        %v431 = vmul.f32 %v406, %v430
        %v432 = vmin.f32 %v431, 1.0
        %v433 = vmax.f32 %v432, -1.0
        %v434 = vmul.f32 %v313, %v313
        %v435 = vmin.f32 16.0, %v434
        %v436 = vmul.f32 %v435, 2.1237322e-06
        %v437 = vadd.f32 %v436, 0.00028619796
        %v438 = vmul.f32 %v435, %v437
        %v439 = vadd.f32 %v438, 0.0036580483
        %v440 = vmul.f32 %v435, %v439
        %v441 = vadd.f32 %v440, 0.05243302
        %v442 = vmul.f32 %v435, %v441
        %v443 = vadd.f32 %v442, 0.18741608
        %v444 = vmul.f32 %v435, %v443
        %v445 = vadd.f32 %v444, 1.1283791
        %v446 = vmul.f32 %v313, %v445
        %v447 = vmul.f32 %v435, 3.8918573e-05
        %v448 = vadd.f32 %v447, 0.001143296
        %v449 = vmul.f32 %v435, %v448
        %v450 = vadd.f32 %v449, 0.014752088
        %v451 = vmul.f32 %v435, %v450
        %v452 = vadd.f32 %v451, 0.112945676
        %v453 = vmul.f32 %v435, %v452
        %v454 = vadd.f32 %v453, 0.4994258
        %v455 = vmul.f32 %v435, %v454
        %v456 = vadd.f32 %v455, 1.0
        %v457 = vrcp.pop %v456
        %v458 = vmul.f32 %v456, %v457
        %v459 = vsub.f32 1.0, %v458
        %v460 = vmul.f32 %v457, %v459
        %v461 = vadd.f32 %v457, %v460
        %vm462 = vweird.f32 %v456
        %vm463 = vweird.f32 %v457
        %vm464 = vmor %vm462, %vm463
        %v465 = vsel %vm464, %v457, %v461
        %v466 = vand.u32 2147483647, %v456
        %vm467 = vcmp.eq.f32.partialorder %v466, 8.507059e+37
        %v468 = vand.u32 %v456, 2147483648
        %v469 = vor.u32 1.1754944e-38, %v468
        %v470 = vsel %vm467, %v469, %v465
        %v471 = vmul.f32 %v446, %v470
        %v472 = vmin.f32 %v471, 1.0
        %v473 = vmax.f32 %v472, -1.0
        %v474 = vadd.f32 %v353, 1.0
        %v475 = vadd.f32 %v393, 1.0
        %v476 = vadd.f32 %v433, 1.0
        %v477 = vadd.f32 %v473, 1.0
        %v478 = vmul.f32 %v306, %v474
        %v479 = vmul.f32 %v307, %v475
        %v480 = vmul.f32 %v308, %v476
        %v481 = vmul.f32 %v309, %v477
        %v482 = vadd.f32 %v478, 1.0
        %v483 = vadd.f32 %v479, 1.0
        %v484 = vadd.f32 %v480, 1.0
        %v485 = vadd.f32 %v481, 1.0
        %v486 = vld [vmem:[%s254] sm:$0xff]
        %v487 = vld [vmem:[%s254 + $0x8] sm:$0xff]
        %v488 = vld [vmem:[%s254 + $0x10] sm:$0xff]
        %v489 = vld [vmem:[%s254 + $0x18] sm:$0xff]
        %v490 = vmul.f32 %v486, 0.5
        %v491 = vmul.f32 %v487, 0.5
        %v492 = vmul.f32 %v488, 0.5
        %v493 = vmul.f32 %v489, 0.5
        %v494 = vmul.f32 %v486, 0.70710677
        %v495 = vmul.f32 %v487, 0.70710677
        %v496 = vmul.f32 %v488, 0.70710677
        %v497 = vmul.f32 %v489, 0.70710677
        %v498 = vmul.f32 %v494, %v494
        %v499 = vmin.f32 16.0, %v498
        %v500 = vmul.f32 %v499, 2.1237322e-06
        %v501 = vadd.f32 %v500, 0.00028619796
        %v502 = vmul.f32 %v499, %v501
        %v503 = vadd.f32 %v502, 0.0036580483
        %v504 = vmul.f32 %v499, %v503
        %v505 = vadd.f32 %v504, 0.05243302
        %v506 = vmul.f32 %v499, %v505
        %v507 = vadd.f32 %v506, 0.18741608
        %v508 = vmul.f32 %v499, %v507
        %v509 = vadd.f32 %v508, 1.1283791
        %v510 = vmul.f32 %v494, %v509
        %v511 = vmul.f32 %v499, 3.8918573e-05
        %v512 = vadd.f32 %v511, 0.001143296
        %v513 = vmul.f32 %v499, %v512
        %v514 = vadd.f32 %v513, 0.014752088
        %v515 = vmul.f32 %v499, %v514
        %v516 = vadd.f32 %v515, 0.112945676
        %v517 = vmul.f32 %v499, %v516
        %v518 = vadd.f32 %v517, 0.4994258
        %v519 = vmul.f32 %v499, %v518
        %v520 = vadd.f32 %v519, 1.0
        %v521 = vrcp.pop %v520
        %v522 = vmul.f32 %v520, %v521
        %v523 = vsub.f32 1.0, %v522
        %v524 = vmul.f32 %v521, %v523
        %v525 = vadd.f32 %v521, %v524
        %vm526 = vweird.f32 %v520
        %vm527 = vweird.f32 %v521
        %vm528 = vmor %vm526, %vm527
        %v529 = vsel %vm528, %v521, %v525
        %v530 = vand.u32 2147483647, %v520
        %vm531 = vcmp.eq.f32.partialorder %v530, 8.507059e+37
        %v532 = vand.u32 %v520, 2147483648
        %v533 = vor.u32 1.1754944e-38, %v532
        %v534 = vsel %vm531, %v533, %v529
        %v535 = vmul.f32 %v510, %v534
        %v536 = vmin.f32 %v535, 1.0
        %v537 = vmax.f32 %v536, -1.0
        %v538 = vmul.f32 %v495, %v495
        %v539 = vmin.f32 16.0, %v538
        %v540 = vmul.f32 %v539, 2.1237322e-06
        %v541 = vadd.f32 %v540, 0.00028619796
        %v542 = vmul.f32 %v539, %v541
        %v543 = vadd.f32 %v542, 0.0036580483
        %v544 = vmul.f32 %v539, %v543
        %v545 = vadd.f32 %v544, 0.05243302
        %v546 = vmul.f32 %v539, %v545
        %v547 = vadd.f32 %v546, 0.18741608
        %v548 = vmul.f32 %v539, %v547
        %v549 = vadd.f32 %v548, 1.1283791
        %v550 = vmul.f32 %v495, %v549
        %v551 = vmul.f32 %v539, 3.8918573e-05
        %v552 = vadd.f32 %v551, 0.001143296
        %v553 = vmul.f32 %v539, %v552
        %v554 = vadd.f32 %v553, 0.014752088
        %v555 = vmul.f32 %v539, %v554
        %v556 = vadd.f32 %v555, 0.112945676
        %v557 = vmul.f32 %v539, %v556
        %v558 = vadd.f32 %v557, 0.4994258
        %v559 = vmul.f32 %v539, %v558
        %v560 = vadd.f32 %v559, 1.0
        %v561 = vrcp.pop %v560
        %v562 = vmul.f32 %v560, %v561
        %v563 = vsub.f32 1.0, %v562
        %v564 = vmul.f32 %v561, %v563
        %v565 = vadd.f32 %v561, %v564
        %vm566 = vweird.f32 %v560
        %vm567 = vweird.f32 %v561
        %vm568 = vmor %vm566, %vm567
        %v569 = vsel %vm568, %v561, %v565
        %v570 = vand.u32 2147483647, %v560
        %vm571 = vcmp.eq.f32.partialorder %v570, 8.507059e+37
        %v572 = vand.u32 %v560, 2147483648
        %v573 = vor.u32 1.1754944e-38, %v572
        %v574 = vsel %vm571, %v573, %v569
        %v575 = vmul.f32 %v550, %v574
        %v576 = vmin.f32 %v575, 1.0
        %v577 = vmax.f32 %v576, -1.0
        %v578 = vmul.f32 %v496, %v496
        %v579 = vmin.f32 16.0, %v578
        %v580 = vmul.f32 %v579, 2.1237322e-06
        %v581 = vadd.f32 %v580, 0.00028619796
        %v582 = vmul.f32 %v579, %v581
        %v583 = vadd.f32 %v582, 0.0036580483
        %v584 = vmul.f32 %v579, %v583
        %v585 = vadd.f32 %v584, 0.05243302
        %v586 = vmul.f32 %v579, %v585
        %v587 = vadd.f32 %v586, 0.18741608
        %v588 = vmul.f32 %v579, %v587
        %v589 = vadd.f32 %v588, 1.1283791
        %v590 = vmul.f32 %v496, %v589
        %v591 = vmul.f32 %v579, 3.8918573e-05
        %v592 = vadd.f32 %v591, 0.001143296
        %v593 = vmul.f32 %v579, %v592
        %v594 = vadd.f32 %v593, 0.014752088
        %v595 = vmul.f32 %v579, %v594
        %v596 = vadd.f32 %v595, 0.112945676
        %v597 = vmul.f32 %v579, %v596
        %v598 = vadd.f32 %v597, 0.4994258
        %v599 = vmul.f32 %v579, %v598
        %v600 = vadd.f32 %v599, 1.0
        %v601 = vrcp.pop %v600
        %v602 = vmul.f32 %v600, %v601
        %v603 = vsub.f32 1.0, %v602
        %v604 = vmul.f32 %v601, %v603
        %v605 = vadd.f32 %v601, %v604
        %vm606 = vweird.f32 %v600
        %vm607 = vweird.f32 %v601
        %vm608 = vmor %vm606, %vm607
        %v609 = vsel %vm608, %v601, %v605
        %v610 = vand.u32 2147483647, %v600
        %vm611 = vcmp.eq.f32.partialorder %v610, 8.507059e+37
        %v612 = vand.u32 %v600, 2147483648
        %v613 = vor.u32 1.1754944e-38, %v612
        %v614 = vsel %vm611, %v613, %v609
        %v615 = vmul.f32 %v590, %v614
        %v616 = vmin.f32 %v615, 1.0
        %v617 = vmax.f32 %v616, -1.0
        %v618 = vmul.f32 %v497, %v497
        %v619 = vmin.f32 16.0, %v618
        %v620 = vmul.f32 %v619, 2.1237322e-06
        %v621 = vadd.f32 %v620, 0.00028619796
        %v622 = vmul.f32 %v619, %v621
        %v623 = vadd.f32 %v622, 0.0036580483
        %v624 = vmul.f32 %v619, %v623
        %v625 = vadd.f32 %v624, 0.05243302
        %v626 = vmul.f32 %v619, %v625
        %v627 = vadd.f32 %v626, 0.18741608
        %v628 = vmul.f32 %v619, %v627
        %v629 = vadd.f32 %v628, 1.1283791
        %v630 = vmul.f32 %v497, %v629
        %v631 = vmul.f32 %v619, 3.8918573e-05
        %v632 = vadd.f32 %v631, 0.001143296
        %v633 = vmul.f32 %v619, %v632
        %v634 = vadd.f32 %v633, 0.014752088
        %v635 = vmul.f32 %v619, %v634
        %v636 = vadd.f32 %v635, 0.112945676
        %v637 = vmul.f32 %v619, %v636
        %v638 = vadd.f32 %v637, 0.4994258
        %v639 = vmul.f32 %v619, %v638
        %v640 = vadd.f32 %v639, 1.0
        %v641 = vrcp.pop %v640
        %v642 = vmul.f32 %v640, %v641
        %v643 = vsub.f32 1.0, %v642
        %v644 = vmul.f32 %v641, %v643
        %v645 = vadd.f32 %v641, %v644
        %vm646 = vweird.f32 %v640
        %vm647 = vweird.f32 %v641
        %vm648 = vmor %vm646, %vm647
        %v649 = vsel %vm648, %v641, %v645
        %v650 = vand.u32 2147483647, %v640
        %vm651 = vcmp.eq.f32.partialorder %v650, 8.507059e+37
        %v652 = vand.u32 %v640, 2147483648
        %v653 = vor.u32 1.1754944e-38, %v652
        %v654 = vsel %vm651, %v653, %v649
        %v655 = vmul.f32 %v630, %v654
        %v656 = vmin.f32 %v655, 1.0
        %v657 = vmax.f32 %v656, -1.0
        %v658 = vadd.f32 %v537, 1.0
        %v659 = vadd.f32 %v577, 1.0
        %v660 = vadd.f32 %v617, 1.0
        %v661 = vadd.f32 %v657, 1.0
        %v662 = vmul.f32 %v490, %v658
        %v663 = vmul.f32 %v491, %v659
        %v664 = vmul.f32 %v492, %v660
        %v665 = vmul.f32 %v493, %v661
        %v666 = vadd.f32 %v662, 1.0
        %v667 = vadd.f32 %v663, 1.0
        %v668 = vadd.f32 %v664, 1.0
        %v669 = vadd.f32 %v665, 1.0
        %v670 = vmul.f32 %v482, %v666
        %v671 = vmul.f32 %v483, %v667
        %v672 = vmul.f32 %v484, %v668
        %v673 = vmul.f32 %v485, %v669
        %v674 = vadd.f32 %v670, %v672
        %v675 = vrot.slane %v674, 4
        %v676 = vadd.f32 %v674, %v675
        %v677 = vrot.slane %v676, 2
        %v678 = vadd.f32 %v676, %v677
        %v679 = vrot.slane %v678, 1
        %v680 = vadd.f32 %v678, %v679
        %vm681 = vcmask 588800
        %v682 = vsel %vm681, %v671, 0.0
        %v683 = vsel %vm681, %v673, 0.0
        %v684 = vadd.f32 %v682, %v683
        %v685 = vrot.slane %v684, 4
        %v686 = vadd.f32 %v684, %v685
        %v687 = vrot.slane %v686, 2
        %v688 = vadd.f32 %v686, %v687
        %v689 = vrot.slane %v688, 1
        %v690 = vadd.f32 %v688, %v689
        %v691 = vmul.f32 %v680, 0.25
        %v692 = vmul.f32 %v690, 0.25
        %v693 = vmul.f32 %v691, %v482
        %v694 = vmul.f32 %v692, %v483
        %v695 = vmul.f32 %v691, %v484
        %v696 = vmul.f32 %v692, %v485
        %v697 = vmax.f32 %v693, %v695
        %v698 = vrot.slane %v697, 4
        %v699 = vmax.f32 %v697, %v698
        %v700 = vrot.slane %v699, 2
        %v701 = vmax.f32 %v699, %v700
        %v702 = vrot.slane %v701, 1
        %v703 = vmax.f32 %v701, %v702
        %v704 = vsel %vm681, %v694, -inf
        %v705 = vsel %vm681, %v696, -inf
        %v706 = vmax.f32 %v704, %v705
        %v707 = vrot.slane %v706, 4
        %v708 = vmax.f32 %v706, %v707
        %v709 = vrot.slane %v708, 2
        %v710 = vmax.f32 %v708, %v709
        %v711 = vrot.slane %v710, 1
        %v712 = vmax.f32 %v710, %v711
        %v713 = vsub.f32 %v693, %v703
        %v714 = vsub.f32 %v694, %v712
        %v715 = vsub.f32 %v695, %v703
        %v716 = vsub.f32 %v696, %v712
        %v717 = vmul.f32 %v713, 1.442695
        %v718 = vpow.pop %v717
        %v719 = vmul.f32 %v714, 1.442695
        %v720 = vpow.pop %v719
        %v721 = vmul.f32 %v715, 1.442695
        %v722 = vpow.pop %v721
        %v723 = vmul.f32 %v716, 1.442695
        %v724 = vpow.pop %v723
        %v725 = vadd.f32 %v718, %v722
        %v726 = vrot.slane %v725, 4
        %v727 = vadd.f32 %v725, %v726
        %v728 = vrot.slane %v727, 2
        %v729 = vadd.f32 %v727, %v728
        %v730 = vrot.slane %v729, 1
        %v731 = vadd.f32 %v729, %v730
        %v732 = vsel %vm681, %v720, 0.0
        %v733 = vsel %vm681, %v724, 0.0
        %v734 = vadd.f32 %v732, %v733
        %v735 = vrot.slane %v734, 4
        %v736 = vadd.f32 %v734, %v735
        %v737 = vrot.slane %v736, 2
        %v738 = vadd.f32 %v736, %v737
        %v739 = vrot.slane %v738, 1
        %v740 = vadd.f32 %v738, %v739
        %v741 = vrcp.pop %v731
        %v742 = vmul.f32 %v731, %v741
        %v743 = vsub.f32 1.0, %v742
        %v744 = vmul.f32 %v741, %v743
        %v745 = vadd.f32 %v741, %v744
        %vm746 = vweird.f32 %v731
        %vm747 = vweird.f32 %v741
        %vm748 = vmor %vm746, %vm747
        %v749 = vsel %vm748, %v741, %v745
        %v750 = vand.u32 2147483647, %v731
        %vm751 = vcmp.eq.f32.partialorder %v750, 8.507059e+37
        %v752 = vand.u32 %v731, 2147483648
        %v753 = vor.u32 1.1754944e-38, %v752
        %v754 = vsel %vm751, %v753, %v749
        %v755 = vrcp.pop %v740
        %v756 = vmul.f32 %v740, %v755
        %v757 = vsub.f32 1.0, %v756
        %v758 = vmul.f32 %v755, %v757
        %v759 = vadd.f32 %v755, %v758
        %vm760 = vweird.f32 %v740
        %vm761 = vweird.f32 %v755
        %vm762 = vmor %vm760, %vm761
        %v763 = vsel %vm762, %v755, %v759
        %v764 = vand.u32 2147483647, %v740
        %vm765 = vcmp.eq.f32.partialorder %v764, 8.507059e+37
        %v766 = vand.u32 %v740, 2147483648
        %v767 = vor.u32 1.1754944e-38, %v766
        %v768 = vsel %vm765, %v767, %v763
        %v769 = vmul.f32 %v718, %v754
        %v770 = vmul.f32 %v720, %v768
        %v771 = vmul.f32 %v722, %v754
        %v772 = vmul.f32 %v724, %v768
        %v773 = vld [vmem:[%s264] sm:$0xff]
        %v774 = vld [vmem:[%s264 + $0x8] sm:$0xff]
        %v775 = vld [vmem:[%s264 + $0x10] sm:$0xff]
        %v776 = vld [vmem:[%s264 + $0x18] sm:$0xff]
        %v777 = vmul.f32 %v769, %v773
        %v778 = vmul.f32 %v770, %v774
        %v779 = vmul.f32 %v771, %v775
        %v780 = vmul.f32 %v772, %v776
        %781 = vst [vmem:[%s297] sm:$0xff] %v777
        %782 = vst.msk [vmem:[%s297 + $0x8] sm:$0xff] %vm681, %v778
        %783 = vst [vmem:[%s297 + $0x10] sm:$0xff] %v779
        %784 = vst.msk [vmem:[%s297 + $0x18] sm:$0xff] %vm681, %v780
        %s785 = sand.u32 %s129, 1
        %s786 = scalar_lea.sflag [#allocation4], %s785
        %s787 = sand.u32 %s129, 1
        %s788 = smul.addr %s787, 32
        %s789 = scalar_lea.vmem [#allocation8], %s788
        // Predicated region
        $region45: #{tpu_custom_call.1} parent=31 // pred_check
          %p790 = pneg %p139
        $region46: #{tpu_custom_call.1} parent=31 // pred_check_branch
          %792 = sbr.rel (%p790) target = $region48
        $region47: #{tpu_custom_call.1} parent=31 // pred_region
          %s793 = smul.u32 2, %s28
          %795 = vsyncadd %s786, 0
          %s796 = smul.addr %s27, 4
          %s797 = sadd.s32 %s793, %s796
          %s798 = smul.addr %s797, 8
          %s799 = scalar_lea.hbm %s3, %s798
          %s800 = sshll.u32 %s789, 4
          %s801 = int_to_ptr.vmem [resolvable:$true] %s800
          %s802 = sshll.u32 %s799, 4
          %s803 = int_to_ptr.hbm [resolvable:$true] %s802
          %808 = dma.vmem_to_hbm [thread:$0]  %s801, 512, %s803, %s786, 256, 256, 16
        $region48: #{tpu_custom_call.1} parent=31 // pred_fallthru
          _
      $region32: #{tpu_custom_call.1} parent=5 // pred_fallthru
        _
      %p809 = scmp.le.s32.totalorder 2, %s18
      // Predicated region
      $region49: #{tpu_custom_call.1} parent=5 // pred_check
        %p810 = pneg %p809
      $region50: #{tpu_custom_call.1} parent=5 // pred_check_branch
        %812 = sbr.rel (%p810) target = $region52
      $region51: #{tpu_custom_call.1} parent=5 // pred_region
        %s813 = ssub.s32 %s18, 2
        // Predicated region
        $region53: #{tpu_custom_call.1} parent=51 // pred_check
          %p814 = pneg %p145
        $region54: #{tpu_custom_call.1} parent=51 // pred_check_branch
          %816 = sbr.rel (%p814) target = $region56
        $region55: #{tpu_custom_call.1} parent=51 // pred_region
          %s817 = sand.u32 %s130, 1
          %s818 = scalar_lea.sflag [#allocation4], %s817
          %s819 = sand.u32 %s130, 1
          %s820 = smul.addr %s819, 32
          %s821 = scalar_lea.vmem [#allocation8], %s820
          %823 = dma.done %s818, 512
        $region56: #{tpu_custom_call.1} parent=51 // pred_fallthru
          _
      $region52: #{tpu_custom_call.1} parent=5 // pred_fallthru
        _
    $region6: #{tpu_custom_call.1} parent=1 // loop_footer
      %s22 = sadd.s32 1, %s18
    $region7: #{tpu_custom_call.1} parent=1 // loop_footer_branch
      %17 = sbr.rel target = $region3
    $region8: #{tpu_custom_call.1} parent=1 // loop_exit
      _
    %824 = vsyncpa [#allocation3], 1
    %s825 = scalar_lea.sflag [#allocation3], 1
    %826 = vsyncpa %s825, 1
    %827 = vsyncpa [#allocation6], 1
    %s828 = scalar_lea.sflag [#allocation6], 1
    %829 = vsyncpa %s828, 1
    %830 = vsyncpa [#allocation4], 1
    %s831 = scalar_lea.sflag [#allocation4], 1
    %832 = vsyncpa %s831, 1

</llo_original>
